<compile_context>
chip_gen: v7x
topology: tpu7x:2x2x1
jax: 0.10.0
libtpu: 0.0.40
codegen_flags: <defaults>
</compile_context>

<pallas_src>
import jax
import jax.numpy as jnp
from jax.experimental import pallas as pl
from jax.experimental.pallas import tpu as pltpu


def _make_kernel(layers_per_step: int, use_scratch: bool):
    """Build a kernel that applies `layers_per_step` Linear layers per grid step."""

    def kernel(x_ref, w_ref, b_ref, o_ref, *scratch):
        # x_ref: (B, F)            input activations (read only at step 0)
        # w_ref: (C, F, F)         this step's weights, pre-transposed to (in, out)
        # b_ref: (L, F) f32        ALL biases, VMEM-resident (constant index_map)
        # o_ref: (B, F)            output; doubles as the resident accumulator
        #                          when it is f32
        # scratch[0]: (B, F) f32   accumulator when output dtype is not f32
        acc_ref = scratch[0] if use_scratch else o_ref
        step = pl.program_id(0)
        n_steps = pl.num_programs(0)

        @pl.when(step == 0)
        def _():
            acc_ref[...] = x_ref[...].astype(acc_ref.dtype)

        base = step * layers_per_step
        h = acc_ref[...].astype(jnp.float32)
        # Static, short unrolled loop over the fused layers of this step.
        for c in range(layers_per_step):
            w = w_ref[c]                              # (F_in, F_out), plain (K, N)
            b = b_ref[pl.ds(base + c, 1), :]          # (1, F) resident bias, f32
            lhs = h if w.dtype == jnp.float32 else h.astype(w.dtype)
            h = jnp.dot(lhs, w, preferred_element_type=jnp.float32) + b
        acc_ref[...] = h.astype(acc_ref.dtype)

        if use_scratch:
            @pl.when(step == n_steps - 1)
            def _():
                o_ref[...] = acc_ref[...].astype(o_ref.dtype)

    return kernel


def _largest_divisor_leq(n: int, cap: int) -> int:
    cap = max(1, min(cap, n))
    for d in range(cap, 0, -1):
        if n % d == 0:
            return d
    return 1


def my_model_forward(x, weights, biases, *, weight_dtype=None, layers_per_step=None):
    """x: (B, F); weights: (L, F, F) PyTorch (out, in); biases: (L, F).

    weight_dtype: optional streaming dtype for the weights (e.g. jnp.bfloat16
    to halve HBM traffic).  Default None keeps f32 (bit-parity with PyTorch).
    """
    B, F = x.shape
    L = weights.shape[0]

    # One-time layout transform: (out, in) -> (in, out) so y = x @ W_t + b.
    w_t = jnp.transpose(weights, (0, 2, 1))
    if weight_dtype is not None:
        w_t = w_t.astype(weight_dtype)
    b2 = biases.astype(jnp.float32)                   # (L, F), resident

    w_itemsize = jnp.dtype(w_t.dtype).itemsize
    x_itemsize = jnp.dtype(x.dtype).itemsize
    use_scratch = x.dtype != jnp.float32

    # Physical VMEM of this chip generation (128 MiB v5e/v6e, 64 MiB v7x).
    try:
        vmem_cap = int(pltpu.get_tpu_info().vmem_capacity_bytes)
    except Exception:
        vmem_cap = 64 << 20                           # conservative fallback

    # VMEM that is NOT the streamed weight slab (blocks are double-buffered).
    fixed_vmem = (
        2 * B * F * x_itemsize        # x block
        + 2 * B * F * x_itemsize      # output block
        + 2 * L * F * 4               # resident biases (+ sublane-padding slack)
        + (B * F * 4 if use_scratch else 0)
    )

    # Fusion factor C: 2 * C * F * F * itemsize (double-buffered weights) fits
    # in roughly half the physical VMEM.
    per_layer_w = 2 * F * F * w_itemsize
    weight_budget = max(vmem_cap // 2 - fixed_vmem, per_layer_w)
    c_cap = max(1, weight_budget // per_layer_w)
    if layers_per_step is None:
        layers_per_step = _largest_divisor_leq(L, c_cap)
    assert L % layers_per_step == 0, "layers_per_step must divide n_layers"
    C = layers_per_step
    n_steps = L // C

    vmem_needed = fixed_vmem + C * per_layer_w
    vmem_limit = min(vmem_needed + (4 << 20), vmem_cap)

    kernel = _make_kernel(C, use_scratch)
    scratch_shapes = [pltpu.VMEM((B, F), jnp.float32)] if use_scratch else []

    return pl.pallas_call(
        kernel,
        out_shape=jax.ShapeDtypeStruct((B, F), x.dtype),
        grid=(n_steps,),
        in_specs=[
            pl.BlockSpec((B, F), lambda s: (0, 0)),        # x: same block every step
            pl.BlockSpec((C, F, F), lambda s: (s, 0, 0)),  # stream C layers' weights
            pl.BlockSpec((L, F), lambda s: (0, 0)),        # biases: resident, DMA once
        ],
        out_specs=pl.BlockSpec((B, F), lambda s: (0, 0)),  # resident accumulator
        scratch_shapes=scratch_shapes,
        compiler_params=pltpu.CompilerParams(
            dimension_semantics=("arbitrary",),  # layers are sequentially dependent
            vmem_limit_bytes=int(vmem_limit),
        ),
    )(x, w_t, b2)


def init_params(key, n_features, n_layers):
    """Deterministic PyTorch-style Linear init: U(-1/sqrt(in), 1/sqrt(in))."""
    bound = 1.0 / (n_features ** 0.5)
    kw, kb = jax.random.split(key)
    weights = jax.random.uniform(
        kw, (n_layers, n_features, n_features), jnp.float32, -bound, bound)
    biases = jax.random.uniform(
        kb, (n_layers, n_features), jnp.float32, -bound, bound)
    return weights, biases


def reference_forward(x, weights, biases):
    h = x.astype(jnp.float32)
    for l in range(weights.shape[0]):
        h = h @ weights[l].T + biases[l]
    return h.astype(x.dtype)


if __name__ == "__main__":
    B = 8          # batch (multiple of 8 for sublane alignment)
    F = 128        # n_features (multiple of 128 for lane alignment)
    L = 3          # n_layers

    key = jax.random.PRNGKey(0)
    kx, kp = jax.random.split(key)
    x = jax.random.normal(kx, (B, F), jnp.float32)
    weights, biases = init_params(kp, F, L)

    ref = reference_forward(x, weights, biases)

    # f32 weight path: bit-level parity with the PyTorch/JAX reference.
    out = my_model_forward(x, weights, biases)
    out = jax.block_until_ready(out)
    assert out.shape == (B, F)
    assert jnp.allclose(out, ref, atol=1e-4, rtol=1e-4), "mismatch vs pure-JAX reference"

    # bf16 weight-streaming path (halves HBM traffic): loose tolerance check.
    out_bf16 = my_model_forward(x, weights, biases, weight_dtype=jnp.bfloat16)
    out_bf16 = jax.block_until_ready(out_bf16)
    assert jnp.allclose(out_bf16, ref, atol=5e-2, rtol=5e-2), "bf16 path diverged too far"

    print("KERNEL_OK")
</pallas_src>

<mosaic_0001>
module attributes {stable_mosaic.version = 11 : i64} {
  func.func @kernel(%arg0: i32, %arg1: memref<8x128xf32, #tpu.memory_space<vmem>>, %arg2: memref<3x128x128xf32, #tpu.memory_space<vmem>>, %arg3: memref<3x128xf32, #tpu.memory_space<vmem>>, %arg4: memref<8x128xf32, #tpu.memory_space<vmem>>) attributes {dimension_semantics = [#tpu.dimension_semantics<arbitrary>], iteration_bounds = array<i64: 1>, scalar_prefetch = 0 : i64, scratch_operands = 0 : i64, tpu.core_type = #tpu.core_type<tc>, window_params = [{pipeline_mode = #tpu.pipeline_mode<synchronous>, transform_indices = @transform_0, window_bounds = array<i64: 8, 128>}, {transform_indices = @transform_1, window_bounds = array<i64: 3, 128, 128>}, {pipeline_mode = #tpu.pipeline_mode<synchronous>, transform_indices = @transform_2, window_bounds = array<i64: 3, 128>}, {pipeline_mode = #tpu.pipeline_mode<synchronous>, transform_indices = @transform_3, window_bounds = array<i64: 8, 128>}]} {
    %c0_i32 = arith.constant 0 : i32
    %0 = arith.cmpi eq, %arg0, %c0_i32 : i32
    %1 = arith.extui %0 : i1 to i32
    %c0_i32_0 = arith.constant 0 : i32
    %2 = arith.cmpi ne, %1, %c0_i32_0 : i32
    scf.if %2 {
      %c0_17 = arith.constant 0 : index
      %c0_18 = arith.constant 0 : index
      %30 = vector.load %arg1[%c0_17, %c0_18] : memref<8x128xf32, #tpu.memory_space<vmem>>, vector<8x128xf32>
      %c0_19 = arith.constant 0 : index
      %c0_20 = arith.constant 0 : index
      %31 = vector.load %arg4[%c0_19, %c0_20] : memref<8x128xf32, #tpu.memory_space<vmem>>, vector<8x128xf32>
      tpu.vector_store %arg4[%c0_19, %c0_20], %30 {strides = array<i32>} : memref<8x128xf32, #tpu.memory_space<vmem>>, vector<8x128xf32>,
    } else {
    }
    %c3_i32 = arith.constant 3 : i32
    %3 = arith.muli %arg0, %c3_i32 : i32
    %c0 = arith.constant 0 : index
    %c0_1 = arith.constant 0 : index
    %4 = vector.load %arg4[%c0, %c0_1] : memref<8x128xf32, #tpu.memory_space<vmem>>, vector<8x128xf32>
    %c0_2 = arith.constant 0 : index
    %c0_3 = arith.constant 0 : index
    %c0_4 = arith.constant 0 : index
    %5 = vector.load %arg2[%c0_2, %c0_3, %c0_4] : memref<3x128x128xf32, #tpu.memory_space<vmem>>, vector<1x128x128xf32>
    %6 = vector.shape_cast %5 : vector<1x128x128xf32> to vector<128x128xf32>
    %c0_i32_5 = arith.constant 0 : i32
    %7 = arith.addi %3, %c0_i32_5 : i32
    %8 = arith.index_cast %7 : i32 to index
    %c0_6 = arith.constant 0 : index
    %9 = vector.load %arg3[%8, %c0_6] : memref<3x128xf32, #tpu.memory_space<vmem>>, vector<1x128xf32>
    %cst = arith.constant dense<0.000000e+00> : vector<8x128xf32>
    %10 = tpu.matmul %4, %6, %cst {dimension_numbers = #tpu.dot_dimension_numbers<[1], [0], [0], [1], [0, 0, 1, 1], [], []>} : vector<8x128xf32>, vector<128x128xf32>, vector<8x128xf32> -> vector<8x128xf32>
    %11 = vector.broadcast %9 : vector<1x128xf32> to vector<8x128xf32>
    %12 = arith.addf %10, %11 : vector<8x128xf32>
    %c1 = arith.constant 1 : index
    %c0_7 = arith.constant 0 : index
    %c0_8 = arith.constant 0 : index
    %13 = vector.load %arg2[%c1, %c0_7, %c0_8] : memref<3x128x128xf32, #tpu.memory_space<vmem>>, vector<1x128x128xf32>
    %14 = vector.shape_cast %13 : vector<1x128x128xf32> to vector<128x128xf32>
    %c1_i32 = arith.constant 1 : i32
    %15 = arith.addi %3, %c1_i32 : i32
    %16 = arith.index_cast %15 : i32 to index
    %c0_9 = arith.constant 0 : index
    %17 = vector.load %arg3[%16, %c0_9] : memref<3x128xf32, #tpu.memory_space<vmem>>, vector<1x128xf32>
    %cst_10 = arith.constant dense<0.000000e+00> : vector<8x128xf32>
    %18 = tpu.matmul %12, %14, %cst_10 {dimension_numbers = #tpu.dot_dimension_numbers<[1], [0], [0], [1], [0, 0, 1, 1], [], []>} : vector<8x128xf32>, vector<128x128xf32>, vector<8x128xf32> -> vector<8x128xf32>
    %19 = vector.broadcast %17 : vector<1x128xf32> to vector<8x128xf32>
    %20 = arith.addf %18, %19 : vector<8x128xf32>
    %c2 = arith.constant 2 : index
    %c0_11 = arith.constant 0 : index
    %c0_12 = arith.constant 0 : index
    %21 = vector.load %arg2[%c2, %c0_11, %c0_12] : memref<3x128x128xf32, #tpu.memory_space<vmem>>, vector<1x128x128xf32>
    %22 = vector.shape_cast %21 : vector<1x128x128xf32> to vector<128x128xf32>
    %c2_i32 = arith.constant 2 : i32
    %23 = arith.addi %3, %c2_i32 : i32
    %24 = arith.index_cast %23 : i32 to index
    %c0_13 = arith.constant 0 : index
    %25 = vector.load %arg3[%24, %c0_13] : memref<3x128xf32, #tpu.memory_space<vmem>>, vector<1x128xf32>
    %cst_14 = arith.constant dense<0.000000e+00> : vector<8x128xf32>
    %26 = tpu.matmul %20, %22, %cst_14 {dimension_numbers = #tpu.dot_dimension_numbers<[1], [0], [0], [1], [0, 0, 1, 1], [], []>} : vector<8x128xf32>, vector<128x128xf32>, vector<8x128xf32> -> vector<8x128xf32>
    %27 = vector.broadcast %25 : vector<1x128xf32> to vector<8x128xf32>
    %28 = arith.addf %26, %27 : vector<8x128xf32>
    %c0_15 = arith.constant 0 : index
    %c0_16 = arith.constant 0 : index
    %29 = vector.load %arg4[%c0_15, %c0_16] : memref<8x128xf32, #tpu.memory_space<vmem>>, vector<8x128xf32>
    tpu.vector_store %arg4[%c0_15, %c0_16], %28 {strides = array<i32>} : memref<8x128xf32, #tpu.memory_space<vmem>>, vector<8x128xf32>,
    return
  }
  func.func @transform_0(%arg0: i32) -> (i32, i32) {
    %c0_i32 = arith.constant 0 : i32
    %c0_i32_0 = arith.constant 0 : i32
    %c0_i32_1 = arith.constant 0 : i32
    return %c0_i32, %c0_i32_0 : i32, i32
  }
  func.func @transform_1(%arg0: i32) -> (i32, i32, i32) {
    %c0_i32 = arith.constant 0 : i32
    %c0_i32_0 = arith.constant 0 : i32
    %c0_i32_1 = arith.constant 0 : i32
    return %arg0, %c0_i32, %c0_i32_0 : i32, i32, i32
  }
  func.func @transform_2(%arg0: i32) -> (i32, i32) {
    %c0_i32 = arith.constant 0 : i32
    %c0_i32_0 = arith.constant 0 : i32
    %c0_i32_1 = arith.constant 0 : i32
    return %c0_i32, %c0_i32_0 : i32, i32
  }
  func.func @transform_3(%arg0: i32) -> (i32, i32) {
    %c0_i32 = arith.constant 0 : i32
    %c0_i32_0 = arith.constant 0 : i32
    %c0_i32_1 = arith.constant 0 : i32
    return %c0_i32, %c0_i32_0 : i32, i32
  }
}

</mosaic_0001>

<llo_original>
// kernel: tpu_custom_call.1
$region0: #{tpu_custom_call.1}
  #allocation0 [shape = 'u32[]', space=smem, size = 0x4, offset = 0x4, fixed_abs, tag = 'smem constant byte address 0x4 - core index']
  #allocation1 [shape = 'u32[144,128]{1,0:T(1,128)}', space=vmem, size = 0x12000, scoped, tag = 'internal scratch']
  %s0 = inlined_call_operand.hbm [shape: f32[8,128], index: 0, kind: input, shape index: {}]
  %s1 = inlined_call_operand.hbm [shape: f32[3,128,128], index: 1, kind: input, shape index: {}]
  %s2 = inlined_call_operand.vmem [shape: f32[3,128], index: 2, kind: input, shape index: {}]
  %s3 = inlined_call_operand.hbm [shape: f32[8,128], index: 3, kind: output, shape index: {}]
  %s4 = sld [smem:[#allocation0]]
  $region34: #{tpu_custom_call.1} parent=0
    _
  %s6 = ssub.s32 1, %s4
  %s7 = scalar_select 0, %s6, %s4
  $region1: #{tpu_custom_call.1} parent=0
    #allocation2 [shape = 'u8[4096]{0}', space=vmem, size = 0x1000, scoped, tag = 'input window, operand 0, single buffered']
    #allocation3 [shape = 's32[1]{0}', space=sflag, size = 0x4, scoped, tag = 'scoped memory for tpu_custom_call.1']
    #allocation4 [shape = 's32[1]{0}', space=sflag, size = 0x4, scoped, tag = 'scoped memory for tpu_custom_call.1']
    #allocation5 [shape = 'u8[196608]{0}', space=vmem, size = 0x30000, scoped, tag = 'input window, operand 1, single buffered']
    #allocation6 [shape = 's32[1]{0}', space=sflag, size = 0x4, scoped, tag = 'scoped memory for tpu_custom_call.1']
    #allocation7 [shape = 'u8[4096]{0}', space=vmem, size = 0x1000, scoped, tag = 'output window, operand 0, single buffered']
    %8 = vsyncpa [#allocation3], 0
    %9 = vsyncpa [#allocation6], 0
    %10 = vsyncpa [#allocation4], 0
    // Predicated region
    $region2: #{tpu_custom_call.1} parent=1 // pred_check
      _
    $region3: #{tpu_custom_call.1} parent=1 // pred_check_branch
      %12 = sbr.rel (0) target = $region5
    $region4: #{tpu_custom_call.1} parent=1 // pred_region
      %s14 = ssub.s32 128, 128
      %15 = vsyncadd [#allocation3], %s14
      %s17 = sshll.u32 [#allocation2], 4
      %s18 = int_to_ptr.vmem [resolvable:$true] %s17
      %20 = dma.hbm_to_vmem [thread:$0]  %s0, 128, %s18, [#allocation3]
    $region5: #{tpu_custom_call.1} parent=1 // pred_fallthru
      _
    // Predicated region
    $region6: #{tpu_custom_call.1} parent=1 // pred_check
      _
    $region7: #{tpu_custom_call.1} parent=1 // pred_check_branch
      %22 = sbr.rel (0) target = $region9
    $region8: #{tpu_custom_call.1} parent=1 // pred_region
      %s24 = ssub.s32 6144, 6144
      %25 = vsyncadd [#allocation6], %s24
      %s26 = sshll.u32 [#allocation5], 4
      %s27 = int_to_ptr.vmem [resolvable:$true] %s26
      %32 = dma.hbm_to_vmem [thread:$0]  %s1, 6144, %s27, [#allocation6], 128, 128, 8
    $region9: #{tpu_custom_call.1} parent=1 // pred_fallthru
      _
    // Predicated region
    $region10: #{tpu_custom_call.1} parent=1 // pred_check
      _
    $region11: #{tpu_custom_call.1} parent=1 // pred_check_branch
      %34 = sbr.rel (0) target = $region13
    $region12: #{tpu_custom_call.1} parent=1 // pred_region
      _
    $region13: #{tpu_custom_call.1} parent=1 // pred_fallthru
      _
    // Predicated region
    $region14: #{tpu_custom_call.1} parent=1 // pred_check
      _
    $region15: #{tpu_custom_call.1} parent=1 // pred_check_branch
      %36 = sbr.rel (0) target = $region17
    $region16: #{tpu_custom_call.1} parent=1 // pred_region
      %37 = dma.done [#allocation3], 128
    $region17: #{tpu_custom_call.1} parent=1 // pred_fallthru
      _
    // Predicated region
    $region18: #{tpu_custom_call.1} parent=1 // pred_check
      _
    $region19: #{tpu_custom_call.1} parent=1 // pred_check_branch
      %39 = sbr.rel (0) target = $region21
    $region20: #{tpu_custom_call.1} parent=1 // pred_region
      %40 = dma.done [#allocation6], 6144
    $region21: #{tpu_custom_call.1} parent=1 // pred_fallthru
      _
    %p41 = scmp.eq.s32.totalorder 0, 0
    // Predicated region
    $region22: #{tpu_custom_call.1} parent=1 // pred_check
      %p42 = pneg %p41
    $region23: #{tpu_custom_call.1} parent=1 // pred_check_branch
      %44 = sbr.rel (%p42) target = $region25
    $region24: #{tpu_custom_call.1} parent=1 // pred_region
      %v45 = vld [vmem:[#allocation2] sm:$0xff]
      %46 = vst [vmem:[#allocation7] sm:$0xff] %v45
    $region25: #{tpu_custom_call.1} parent=1 // pred_fallthru
      _
    %s47 = smul.u32 0, 3
    %v48 = vld [vmem:[#allocation7] sm:$0xff]
    %v49 = vld [vmem:[#allocation5] sm:$0xff]
    %v50 = vld [vmem:[#allocation5 + $0x8] sm:$0xff]
    %v51 = vld [vmem:[#allocation5 + $0x10] sm:$0xff]
    %v52 = vld [vmem:[#allocation5 + $0x18] sm:$0xff]
    %v53 = vld [vmem:[#allocation5 + $0x20] sm:$0xff]
    %v54 = vld [vmem:[#allocation5 + $0x28] sm:$0xff]
    %v55 = vld [vmem:[#allocation5 + $0x30] sm:$0xff]
    %v56 = vld [vmem:[#allocation5 + $0x38] sm:$0xff]
    %v57 = vld [vmem:[#allocation5 + $0x40] sm:$0xff]
    %v58 = vld [vmem:[#allocation5 + $0x48] sm:$0xff]
    %v59 = vld [vmem:[#allocation5 + $0x50] sm:$0xff]
    %v60 = vld [vmem:[#allocation5 + $0x58] sm:$0xff]
    %v61 = vld [vmem:[#allocation5 + $0x60] sm:$0xff]
    %v62 = vld [vmem:[#allocation5 + $0x68] sm:$0xff]
    %v63 = vld [vmem:[#allocation5 + $0x70] sm:$0xff]
    %v64 = vld [vmem:[#allocation5 + $0x78] sm:$0xff]
    %s65 = scalar_lea.vmem %s2, %s47
    %v66 = vld [vmem:[%s65] sm:$0x1]
    %v67 = vlaneseq
    %v68 = vshrl.u32 %v67, 7
    %v69 = vsub.s32 0, %v68
    %v70 = vrot.slane %v66, %v69
    %71 = vmatprep.subr.mxu0 0.0
    %72 = vmatpush1.msra.mxu0 %v49
    %73 = vmatprep.subr.mxu0 0.0
    %74 = vmatpush1.msra.mxu0 %v50
    %75 = vmatprep.subr.mxu0 0.0
    %76 = vmatpush1.msra.mxu0 %v51
    %77 = vmatprep.subr.mxu0 0.0
    %78 = vmatpush1.msra.mxu0 %v52
    %79 = vmatprep.subr.mxu0 0.0
    %80 = vmatpush1.msra.mxu0 %v53
    %81 = vmatprep.subr.mxu0 0.0
    %82 = vmatpush1.msra.mxu0 %v54
    %83 = vmatprep.subr.mxu0 0.0
    %84 = vmatpush1.msra.mxu0 %v55
    %85 = vmatprep.subr.mxu0 0.0
    %86 = vmatpush1.msra.mxu0 %v56
    %87 = vmatprep.subr.mxu0 0.0
    %88 = vmatpush1.msra.mxu0 %v57
    %89 = vmatprep.subr.mxu0 0.0
    %90 = vmatpush1.msra.mxu0 %v58
    %91 = vmatprep.subr.mxu0 0.0
    %92 = vmatpush1.msra.mxu0 %v59
    %93 = vmatprep.subr.mxu0 0.0
    %94 = vmatpush1.msra.mxu0 %v60
    %95 = vmatprep.subr.mxu0 0.0
    %96 = vmatpush1.msra.mxu0 %v61
    %97 = vmatprep.subr.mxu0 0.0
    %98 = vmatpush1.msra.mxu0 %v62
    %99 = vmatprep.subr.mxu0 0.0
    %100 = vmatpush1.msra.mxu0 %v63
    %101 = vmatprep.subr.mxu0 0.0
    %102 = vmatpush1.msra.mxu0 %v64
    %103 = vmatprep.subr.mxu0 0.0
    %104 = vmatpush1.msra.mxu0 0.0
    %105 = vmatprep.subr.mxu0 0.0
    %106 = vmatpush1.msra.mxu0 0.0
    %107 = vmatprep.subr.mxu0 0.0
    %108 = vmatpush1.msra.mxu0 0.0
    %109 = vmatprep.subr.mxu0 0.0
    %110 = vmatpush1.msra.mxu0 0.0
    %111 = vmatprep.subr.mxu0 0.0
    %112 = vmatpush1.msra.mxu0 0.0
    %113 = vmatprep.subr.mxu0 0.0
    %114 = vmatpush1.msra.mxu0 0.0
    %115 = vmatprep.subr.mxu0 0.0
    %116 = vmatpush1.msra.mxu0 0.0
    %117 = vmatprep.subr.mxu0 0.0
    %118 = vmatpush1.msra.mxu0 0.0
    %119 = vmatprep.subr.mxu0 0.0
    %120 = vmatpush1.msra.mxu0 0.0
    %121 = vmatprep.subr.mxu0 0.0
    %122 = vmatpush1.msra.mxu0 0.0
    %123 = vmatprep.subr.mxu0 0.0
    %124 = vmatpush1.msra.mxu0 0.0
    %125 = vmatprep.subr.mxu0 0.0
    %126 = vmatpush1.msra.mxu0 0.0
    %127 = vmatprep.subr.mxu0 0.0
    %128 = vmatpush1.msra.mxu0 0.0
    %129 = vmatprep.subr.mxu0 0.0
    %130 = vmatpush1.msra.mxu0 0.0
    %131 = vmatprep.subr.mxu0 0.0
    %132 = vmatpush1.msra.mxu0 0.0
    %133 = vmatprep.subr.mxu0 0.0
    %134 = vmatpush1.msra.mxu0 0.0
    %135 = vmatprep.mubr.f32.mxu0 0.0
    %136 = vmatmul.mubr.f32.gmra.mrb[0].mxu0 %v48
    %v137 = vpop.f32.mrb[0].mxu0
    %v138 = vadd.f32 %v70, %v137
    %v139 = vpop.f32.mrb[0].mxu0
    %140 = vdwg.mxu0
    %s141 = scalar_lea.vmem [#allocation5], 128
    %v142 = vld [vmem:[%s141] sm:$0xff]
    %v143 = vld [vmem:[%s141 + $0x8] sm:$0xff]
    %v144 = vld [vmem:[%s141 + $0x10] sm:$0xff]
    %v145 = vld [vmem:[%s141 + $0x18] sm:$0xff]
    %v146 = vld [vmem:[%s141 + $0x20] sm:$0xff]
    %v147 = vld [vmem:[%s141 + $0x28] sm:$0xff]
    %v148 = vld [vmem:[%s141 + $0x30] sm:$0xff]
    %v149 = vld [vmem:[%s141 + $0x38] sm:$0xff]
    %v150 = vld [vmem:[%s141 + $0x40] sm:$0xff]
    %v151 = vld [vmem:[%s141 + $0x48] sm:$0xff]
    %v152 = vld [vmem:[%s141 + $0x50] sm:$0xff]
    %v153 = vld [vmem:[%s141 + $0x58] sm:$0xff]
    %v154 = vld [vmem:[%s141 + $0x60] sm:$0xff]
    %v155 = vld [vmem:[%s141 + $0x68] sm:$0xff]
    %v156 = vld [vmem:[%s141 + $0x70] sm:$0xff]
    %v157 = vld [vmem:[%s141 + $0x78] sm:$0xff]
    %s158 = sadd.s32 %s47, 1
    %s159 = scalar_lea.vmem %s2, %s158
    %v160 = vld [vmem:[%s159] sm:$0x1]
    %v161 = vlaneseq
    %v162 = vshrl.u32 %v161, 7
    %v163 = vsub.s32 0, %v162
    %v164 = vrot.slane %v160, %v163
    %165 = vmatprep.subr.mxu0 0.0
    %166 = vmatpush1.msra.mxu0 %v142
    %167 = vmatprep.subr.mxu0 0.0
    %168 = vmatpush1.msra.mxu0 %v143
    %169 = vmatprep.subr.mxu0 0.0
    %170 = vmatpush1.msra.mxu0 %v144
    %171 = vmatprep.subr.mxu0 0.0
    %172 = vmatpush1.msra.mxu0 %v145
    %173 = vmatprep.subr.mxu0 0.0
    %174 = vmatpush1.msra.mxu0 %v146
    %175 = vmatprep.subr.mxu0 0.0
    %176 = vmatpush1.msra.mxu0 %v147
    %177 = vmatprep.subr.mxu0 0.0
    %178 = vmatpush1.msra.mxu0 %v148
    %179 = vmatprep.subr.mxu0 0.0
    %180 = vmatpush1.msra.mxu0 %v149
    %181 = vmatprep.subr.mxu0 0.0
    %182 = vmatpush1.msra.mxu0 %v150
    %183 = vmatprep.subr.mxu0 0.0
    %184 = vmatpush1.msra.mxu0 %v151
    %185 = vmatprep.subr.mxu0 0.0
    %186 = vmatpush1.msra.mxu0 %v152
    %187 = vmatprep.subr.mxu0 0.0
    %188 = vmatpush1.msra.mxu0 %v153
    %189 = vmatprep.subr.mxu0 0.0
    %190 = vmatpush1.msra.mxu0 %v154
    %191 = vmatprep.subr.mxu0 0.0
    %192 = vmatpush1.msra.mxu0 %v155
    %193 = vmatprep.subr.mxu0 0.0
    %194 = vmatpush1.msra.mxu0 %v156
    %195 = vmatprep.subr.mxu0 0.0
    %196 = vmatpush1.msra.mxu0 %v157
    %197 = vmatprep.subr.mxu0 0.0
    %198 = vmatpush1.msra.mxu0 0.0
    %199 = vmatprep.subr.mxu0 0.0
    %200 = vmatpush1.msra.mxu0 0.0
    %201 = vmatprep.subr.mxu0 0.0
    %202 = vmatpush1.msra.mxu0 0.0
    %203 = vmatprep.subr.mxu0 0.0
    %204 = vmatpush1.msra.mxu0 0.0
    %205 = vmatprep.subr.mxu0 0.0
    %206 = vmatpush1.msra.mxu0 0.0
    %207 = vmatprep.subr.mxu0 0.0
    %208 = vmatpush1.msra.mxu0 0.0
    %209 = vmatprep.subr.mxu0 0.0
    %210 = vmatpush1.msra.mxu0 0.0
    %211 = vmatprep.subr.mxu0 0.0
    %212 = vmatpush1.msra.mxu0 0.0
    %213 = vmatprep.subr.mxu0 0.0
    %214 = vmatpush1.msra.mxu0 0.0
    %215 = vmatprep.subr.mxu0 0.0
    %216 = vmatpush1.msra.mxu0 0.0
    %217 = vmatprep.subr.mxu0 0.0
    %218 = vmatpush1.msra.mxu0 0.0
    %219 = vmatprep.subr.mxu0 0.0
    %220 = vmatpush1.msra.mxu0 0.0
    %221 = vmatprep.subr.mxu0 0.0
    %222 = vmatpush1.msra.mxu0 0.0
    %223 = vmatprep.subr.mxu0 0.0
    %224 = vmatpush1.msra.mxu0 0.0
    %225 = vmatprep.subr.mxu0 0.0
    %226 = vmatpush1.msra.mxu0 0.0
    %227 = vmatprep.subr.mxu0 0.0
    %228 = vmatpush1.msra.mxu0 0.0
    %229 = vmatprep.mubr.f32.mxu0 0.0
    %230 = vmatmul.mubr.f32.gmra.mrb[0].mxu0 %v138
    %v231 = vpop.f32.mrb[0].mxu0
    %v232 = vadd.f32 %v164, %v231
    %v233 = vpop.f32.mrb[0].mxu0
    %234 = vdwg.mxu0
    %s235 = scalar_lea.vmem [#allocation5], 256
    %v236 = vld [vmem:[%s235] sm:$0xff]
    %v237 = vld [vmem:[%s235 + $0x8] sm:$0xff]
    %v238 = vld [vmem:[%s235 + $0x10] sm:$0xff]
    %v239 = vld [vmem:[%s235 + $0x18] sm:$0xff]
    %v240 = vld [vmem:[%s235 + $0x20] sm:$0xff]
    %v241 = vld [vmem:[%s235 + $0x28] sm:$0xff]
    %v242 = vld [vmem:[%s235 + $0x30] sm:$0xff]
    %v243 = vld [vmem:[%s235 + $0x38] sm:$0xff]
    %v244 = vld [vmem:[%s235 + $0x40] sm:$0xff]
    %v245 = vld [vmem:[%s235 + $0x48] sm:$0xff]
    %v246 = vld [vmem:[%s235 + $0x50] sm:$0xff]
    %v247 = vld [vmem:[%s235 + $0x58] sm:$0xff]
    %v248 = vld [vmem:[%s235 + $0x60] sm:$0xff]
    %v249 = vld [vmem:[%s235 + $0x68] sm:$0xff]
    %v250 = vld [vmem:[%s235 + $0x70] sm:$0xff]
    %v251 = vld [vmem:[%s235 + $0x78] sm:$0xff]
    %s252 = sadd.s32 %s47, 2
    %s253 = scalar_lea.vmem %s2, %s252
    %v254 = vld [vmem:[%s253] sm:$0x1]
    %v255 = vlaneseq
    %v256 = vshrl.u32 %v255, 7
    %v257 = vsub.s32 0, %v256
    %v258 = vrot.slane %v254, %v257
    %259 = vmatprep.subr.mxu0 0.0
    %260 = vmatpush1.msra.mxu0 %v236
    %261 = vmatprep.subr.mxu0 0.0
    %262 = vmatpush1.msra.mxu0 %v237
    %263 = vmatprep.subr.mxu0 0.0
    %264 = vmatpush1.msra.mxu0 %v238
    %265 = vmatprep.subr.mxu0 0.0
    %266 = vmatpush1.msra.mxu0 %v239
    %267 = vmatprep.subr.mxu0 0.0
    %268 = vmatpush1.msra.mxu0 %v240
    %269 = vmatprep.subr.mxu0 0.0
    %270 = vmatpush1.msra.mxu0 %v241
    %271 = vmatprep.subr.mxu0 0.0
    %272 = vmatpush1.msra.mxu0 %v242
    %273 = vmatprep.subr.mxu0 0.0
    %274 = vmatpush1.msra.mxu0 %v243
    %275 = vmatprep.subr.mxu0 0.0
    %276 = vmatpush1.msra.mxu0 %v244
    %277 = vmatprep.subr.mxu0 0.0
    %278 = vmatpush1.msra.mxu0 %v245
    %279 = vmatprep.subr.mxu0 0.0
    %280 = vmatpush1.msra.mxu0 %v246
    %281 = vmatprep.subr.mxu0 0.0
    %282 = vmatpush1.msra.mxu0 %v247
    %283 = vmatprep.subr.mxu0 0.0
    %284 = vmatpush1.msra.mxu0 %v248
    %285 = vmatprep.subr.mxu0 0.0
    %286 = vmatpush1.msra.mxu0 %v249
    %287 = vmatprep.subr.mxu0 0.0
    %288 = vmatpush1.msra.mxu0 %v250
    %289 = vmatprep.subr.mxu0 0.0
    %290 = vmatpush1.msra.mxu0 %v251
    %291 = vmatprep.subr.mxu0 0.0
    %292 = vmatpush1.msra.mxu0 0.0
    %293 = vmatprep.subr.mxu0 0.0
    %294 = vmatpush1.msra.mxu0 0.0
    %295 = vmatprep.subr.mxu0 0.0
    %296 = vmatpush1.msra.mxu0 0.0
    %297 = vmatprep.subr.mxu0 0.0
    %298 = vmatpush1.msra.mxu0 0.0
    %299 = vmatprep.subr.mxu0 0.0
    %300 = vmatpush1.msra.mxu0 0.0
    %301 = vmatprep.subr.mxu0 0.0
    %302 = vmatpush1.msra.mxu0 0.0
    %303 = vmatprep.subr.mxu0 0.0
    %304 = vmatpush1.msra.mxu0 0.0
    %305 = vmatprep.subr.mxu0 0.0
    %306 = vmatpush1.msra.mxu0 0.0
    %307 = vmatprep.subr.mxu0 0.0
    %308 = vmatpush1.msra.mxu0 0.0
    %309 = vmatprep.subr.mxu0 0.0
    %310 = vmatpush1.msra.mxu0 0.0
    %311 = vmatprep.subr.mxu0 0.0
    %312 = vmatpush1.msra.mxu0 0.0
    %313 = vmatprep.subr.mxu0 0.0
    %314 = vmatpush1.msra.mxu0 0.0
    %315 = vmatprep.subr.mxu0 0.0
    %316 = vmatpush1.msra.mxu0 0.0
    %317 = vmatprep.subr.mxu0 0.0
    %318 = vmatpush1.msra.mxu0 0.0
    %319 = vmatprep.subr.mxu0 0.0
    %320 = vmatpush1.msra.mxu0 0.0
    %321 = vmatprep.subr.mxu0 0.0
    %322 = vmatpush1.msra.mxu0 0.0
    %323 = vmatprep.mubr.f32.mxu0 0.0
    %324 = vmatmul.mubr.f32.gmra.mrb[0].mxu0 %v232
    %v325 = vpop.f32.mrb[0].mxu0
    %v326 = vadd.f32 %v258, %v325
    %v327 = vpop.f32.mrb[0].mxu0
    %328 = vdwg.mxu0
    %329 = vst [vmem:[#allocation7] sm:$0xff] %v326
    // Predicated region
    $region26: #{tpu_custom_call.1} parent=1 // pred_check
      _
    $region27: #{tpu_custom_call.1} parent=1 // pred_check_branch
      %331 = sbr.rel (0) target = $region29
    $region28: #{tpu_custom_call.1} parent=1 // pred_region
      %s333 = ssub.s32 128, 128
      %334 = vsyncadd [#allocation4], %s333
      %s336 = sshll.u32 [#allocation7], 4
      %s337 = int_to_ptr.vmem [resolvable:$true] %s336
      %339 = dma.vmem_to_hbm [thread:$0]  %s337, 128, %s3, [#allocation4]
    $region29: #{tpu_custom_call.1} parent=1 // pred_fallthru
      _
    // Predicated region
    $region30: #{tpu_custom_call.1} parent=1 // pred_check
      _
    $region31: #{tpu_custom_call.1} parent=1 // pred_check_branch
      %341 = sbr.rel (0) target = $region33
    $region32: #{tpu_custom_call.1} parent=1 // pred_region
      %342 = dma.done [#allocation4], 128
    $region33: #{tpu_custom_call.1} parent=1 // pred_fallthru
      _
    %343 = vsyncpa [#allocation3], 1
    %344 = vsyncpa [#allocation6], 1
    %345 = vsyncpa [#allocation4], 1

</llo_original>
